<compile_context>
chip_gen: v7x
topology: tpu7x:2x2x1
jax: 0.10.0
libtpu: 0.0.40
codegen_flags: <defaults>
</compile_context>

<pallas_src>
import functools

import jax
import jax.numpy as jnp
from jax.experimental import pallas as pl
from jax.experimental.pallas import tpu as pltpu


# ----------------------------------------------------------------------------
# Kernel: depthwise conv for one (channel-tile, batch) block, NCHW layout.
# ----------------------------------------------------------------------------
def _dwconv_group_kernel(x_ref, w_ref, o_ref, *, strip):
    """x_ref: (1, tc, Hp, Wp) padded input block
       w_ref: (tc, k, k)      per-channel filter taps for this group
       o_ref: (1, tc, Ho, Wo) stride-1 output block
    """
    _, tc, ho, wo = o_ref.shape
    wp = x_ref.shape[3]
    k = w_ref.shape[1]

    # Hoisted loads + single dtype cast (feedback: no per-tap casts).
    x = x_ref[0].astype(jnp.float32)          # (tc, Hp, Wp)
    w = w_ref[...].astype(jnp.float32)        # (tc, k, k)

    # Row strips keep the f32 accumulator and row slabs modest.
    for h0 in range(0, ho, strip):
        hs = min(strip, ho - h0)
        # k second-minor (H) slices per strip -- not k*k.
        rows = [x[:, h0 + dh:h0 + dh + hs, :] for dh in range(k)]   # (tc, hs, Wp)
        acc = jnp.zeros((tc, hs, wo), jnp.float32)
        for dw in range(k):
            # Per-dw partial sum over dh at full padded width (no W shift yet).
            tmp = rows[0] * w[:, 0:1, dw:dw + 1]
            for dh in range(1, k):
                tmp = tmp + rows[dh] * w[:, dh:dh + 1, dw:dw + 1]
            # Single minor-dim (W) shift per dw.
            acc = acc + tmp[:, :, dw:dw + wo]
        o_ref[0, :, h0:h0 + hs, :] = acc.astype(o_ref.dtype)


# ----------------------------------------------------------------------------
# Tiling heuristics (generation aware).
# ----------------------------------------------------------------------------
def _vmem_capacity_bytes():
    try:
        cap = int(getattr(pltpu.get_tpu_info(), "vmem_capacity_bytes", 0))
    except Exception:
        cap = 0
    return cap if cap > 0 else 64 * 2**20      # safe default (v7x size)


def _pick_strip(ho, wp):
    # Keep the accumulator strip around <=16K f32 elements per channel.
    if ho * wp <= 16384:
        return ho
    s = max(8, (16384 // max(wp, 1)) // 8 * 8)
    return min(ho, s)


def _pick_channel_tile(n, cg, hp, wp, ho, wo, k, strip, dtype_bytes, budget):
    """Largest divisor of cg whose working set fits the budget; keeps >=2 grid
    blocks when possible (v7x has 2 TensorCores)."""
    per_c = ((2 * (hp * wp + ho * wo) + 2 * k * k) * dtype_bytes   # dbl-buffered I/O + weights
             + hp * wp * 4                                         # f32 copy of the input block
             + (k + 3) * strip * wp * 4)                           # row slabs + partial sums + acc
    divs = [d for d in range(cg, 0, -1) if cg % d == 0]
    tc = next((d for d in divs if per_c * d <= budget), 1)
    if n * (cg // tc) < 2 and cg > 1:
        tc = next((d for d in divs if d < cg and per_c * d <= budget), 1)
    return tc, per_c


# ----------------------------------------------------------------------------
# Per-group depthwise conv (stride-1 in-kernel; wrapper subsamples if s > 1).
# ----------------------------------------------------------------------------
def _dwconv_group(xs, wg, k, stride):
    n, cg, h, w_dim = xs.shape
    assert k % 2 == 1, "odd kernel sizes expected"
    p = k // 2
    hp, wp = h + 2 * p, w_dim + 2 * p
    ho1, wo1 = hp - k + 1, wp - k + 1           # == h, w for odd k ("same" conv)

    # Group-local halo pad only (each group pays only its own k//2 halo).
    xpad = jnp.pad(xs, ((0, 0), (0, 0), (p, p), (p, p)))

    dtype_bytes = jnp.dtype(xs.dtype).itemsize
    cap = _vmem_capacity_bytes()
    budget = int(cap * 0.45)                    # leave headroom for misc/scratch
    strip = _pick_strip(ho1, wp)
    tc, per_c = _pick_channel_tile(n, cg, hp, wp, ho1, wo1, k, strip,
                                   dtype_bytes, budget)
    vmem_limit = int(min(cap - (2 << 20),
                         max(32 << 20, int(1.5 * per_c * tc) + (8 << 20))))

    grid = (cg // tc, n)                        # inner axis = batch -> weight
                                                # block index constant (no re-DMA)
    kernel = functools.partial(_dwconv_group_kernel, strip=strip)

    out1 = pl.pallas_call(
        kernel,
        out_shape=jax.ShapeDtypeStruct((n, cg, ho1, wo1), xs.dtype),
        grid_spec=pltpu.PrefetchScalarGridSpec(
            num_scalar_prefetch=0,
            grid=grid,
            in_specs=[
                pl.BlockSpec((1, tc, hp, wp), lambda cb, b: (b, cb, 0, 0)),
                pl.BlockSpec((tc, k, k), lambda cb, b: (cb, 0, 0)),
            ],
            out_specs=pl.BlockSpec((1, tc, ho1, wo1),
                                   lambda cb, b: (b, cb, 0, 0)),
        ),
        compiler_params=pltpu.CompilerParams(
            dimension_semantics=("parallel", "parallel"),
            vmem_limit_bytes=vmem_limit,
        ),
        cost_estimate=pl.CostEstimate(
            flops=2 * n * cg * ho1 * wo1 * k * k,
            transcendentals=0,
            bytes_accessed=(int(xpad.size) + int(wg.size)
                            + n * cg * ho1 * wo1) * dtype_bytes,
        ),
    )(xpad, wg)

    if stride > 1:
        # stride-s conv == stride-1 conv sampled every s-th output position.
        # TODO(synk): do this subsampling in-kernel to skip the extra MACs.
        out1 = out1[:, :, ::stride, ::stride]
    return out1


# ----------------------------------------------------------------------------
# MDConv forward (matches the PyTorch module's forward).
# ----------------------------------------------------------------------------
def mdconv_forward(x, weights, kernel_sizes, split_channels, stride=1):
    """x: (N, C, H, W); weights[i]: (C_i, k_i, k_i); sum(C_i) == C."""
    n, c, h, w_dim = x.shape
    assert sum(split_channels) == c
    assert len(weights) == len(kernel_sizes) == len(split_channels)

    outs, start = [], 0
    for wg, k, cg in zip(weights, kernel_sizes, split_channels):
        xs = x[:, start:start + cg]
        start += cg
        outs.append(_dwconv_group(xs, wg, k, stride))
    if len(outs) == 1:
        return outs[0]
    return jnp.concatenate(outs, axis=1)


def mdconv_ref(x, weights, kernel_sizes, split_channels, stride=1):
    """Pure-JAX reference matching the PyTorch forward exactly."""
    outs, start = [], 0
    for wg, k, cg in zip(weights, kernel_sizes, split_channels):
        xs = x[:, start:start + cg]
        start += cg
        rhs = wg.reshape(cg, 1, k, k)            # OIHW, depthwise
        o = jax.lax.conv_general_dilated(
            xs, rhs,
            window_strides=(stride, stride),
            padding=[(k // 2, k // 2), (k // 2, k // 2)],
            feature_group_count=cg,
            dimension_numbers=("NCHW", "OIHW", "NCHW"))
        outs.append(o)
    return jnp.concatenate(outs, axis=1)


if __name__ == "__main__":
    # MDConv(channels=4, kernel_size=[3, 5], split_out_channels=[2, 2], stride=1)
    channels = 4
    kernel_sizes = [3, 5]
    split_channels = [2, 2]
    n, h, w = 2, 16, 16

    key = jax.random.PRNGKey(0)
    keys = jax.random.split(key, 1 + len(kernel_sizes))
    x = jax.random.normal(keys[0], (n, channels, h, w), jnp.float32)
    weights = [
        jax.random.normal(kw, (cg, k, k), jnp.float32) * 0.2
        for kw, cg, k in zip(keys[1:], split_channels, kernel_sizes)
    ]

    # stride = 1 (as in the spec instantiation)
    out = mdconv_forward(x, weights, kernel_sizes, split_channels, stride=1)
    out = jax.block_until_ready(out)
    ref = mdconv_ref(x, weights, kernel_sizes, split_channels, stride=1)
    assert out.shape == ref.shape and out.dtype == x.dtype
    assert jnp.allclose(out, ref, atol=1e-4, rtol=1e-4)

    # also exercise the stride > 1 path
    out2 = mdconv_forward(x, weights, kernel_sizes, split_channels, stride=2)
    out2 = jax.block_until_ready(out2)
    ref2 = mdconv_ref(x, weights, kernel_sizes, split_channels, stride=2)
    assert out2.shape == ref2.shape
    assert jnp.allclose(out2, ref2, atol=1e-4, rtol=1e-4)

    print("KERNEL_OK")
</pallas_src>

<mosaic_0001>
module attributes {stable_mosaic.version = 11 : i64} {
  func.func @_dwconv_group_kernel(%arg0: i32, %arg1: i32, %arg2: memref<1x2x18x18xf32, #tpu.memory_space<vmem>>, %arg3: memref<2x3x3xf32, #tpu.memory_space<vmem>>, %arg4: memref<1x2x16x16xf32, #tpu.memory_space<vmem>>) attributes {dimension_semantics = [#tpu.dimension_semantics<parallel>, #tpu.dimension_semantics<parallel>], iteration_bounds = array<i64: 1, 2>, scalar_prefetch = 0 : i64, scratch_operands = 0 : i64, tpu.core_type = #tpu.core_type<tc>, window_params = [{transform_indices = @transform_0, window_bounds = array<i64: 1, 2, 18, 18>}, {transform_indices = @transform_1, window_bounds = array<i64: 2, 3, 3>}, {transform_indices = @transform_2, window_bounds = array<i64: 1, 2, 16, 16>}]} {
    %c0 = arith.constant 0 : index
    %c0_0 = arith.constant 0 : index
    %c0_1 = arith.constant 0 : index
    %c0_2 = arith.constant 0 : index
    %0 = vector.load %arg2[%c0, %c0_0, %c0_1, %c0_2] : memref<1x2x18x18xf32, #tpu.memory_space<vmem>>, vector<1x2x18x18xf32>
    %1 = vector.shape_cast %0 : vector<1x2x18x18xf32> to vector<2x18x18xf32>
    %c0_3 = arith.constant 0 : index
    %c0_4 = arith.constant 0 : index
    %c0_5 = arith.constant 0 : index
    %2 = vector.load %arg3[%c0_3, %c0_4, %c0_5] : memref<2x3x3xf32, #tpu.memory_space<vmem>>, vector<2x3x3xf32>
    %3 = vector.extract_strided_slice %1 {offsets = [0, 0, 0], sizes = [2, 16, 18], strides = [1, 1, 1]} : vector<2x18x18xf32> to vector<2x16x18xf32>
    %4 = vector.extract_strided_slice %1 {offsets = [0, 1, 0], sizes = [2, 16, 18], strides = [1, 1, 1]} : vector<2x18x18xf32> to vector<2x16x18xf32>
    %5 = vector.extract_strided_slice %1 {offsets = [0, 2, 0], sizes = [2, 16, 18], strides = [1, 1, 1]} : vector<2x18x18xf32> to vector<2x16x18xf32>
    %cst = arith.constant 0.000000e+00 : f32
    %6 = vector.broadcast %cst : f32 to vector<2x16x16xf32>
    %7 = vector.extract_strided_slice %2 {offsets = [0, 0, 0], sizes = [2, 1, 1], strides = [1, 1, 1]} : vector<2x3x3xf32> to vector<2x1x1xf32>
    %8 = vector.broadcast %7 : vector<2x1x1xf32> to vector<2x16x18xf32>
    %9 = arith.mulf %3, %8 : vector<2x16x18xf32>
    %10 = vector.extract_strided_slice %2 {offsets = [0, 1, 0], sizes = [2, 1, 1], strides = [1, 1, 1]} : vector<2x3x3xf32> to vector<2x1x1xf32>
    %11 = vector.broadcast %10 : vector<2x1x1xf32> to vector<2x16x18xf32>
    %12 = arith.mulf %4, %11 : vector<2x16x18xf32>
    %13 = arith.addf %9, %12 : vector<2x16x18xf32>
    %14 = vector.extract_strided_slice %2 {offsets = [0, 2, 0], sizes = [2, 1, 1], strides = [1, 1, 1]} : vector<2x3x3xf32> to vector<2x1x1xf32>
    %15 = vector.broadcast %14 : vector<2x1x1xf32> to vector<2x16x18xf32>
    %16 = arith.mulf %5, %15 : vector<2x16x18xf32>
    %17 = arith.addf %13, %16 : vector<2x16x18xf32>
    %18 = vector.extract_strided_slice %17 {offsets = [0, 0, 0], sizes = [2, 16, 16], strides = [1, 1, 1]} : vector<2x16x18xf32> to vector<2x16x16xf32>
    %19 = arith.addf %6, %18 : vector<2x16x16xf32>
    %20 = vector.extract_strided_slice %2 {offsets = [0, 0, 1], sizes = [2, 1, 1], strides = [1, 1, 1]} : vector<2x3x3xf32> to vector<2x1x1xf32>
    %21 = vector.broadcast %20 : vector<2x1x1xf32> to vector<2x16x18xf32>
    %22 = arith.mulf %3, %21 : vector<2x16x18xf32>
    %23 = vector.extract_strided_slice %2 {offsets = [0, 1, 1], sizes = [2, 1, 1], strides = [1, 1, 1]} : vector<2x3x3xf32> to vector<2x1x1xf32>
    %24 = vector.broadcast %23 : vector<2x1x1xf32> to vector<2x16x18xf32>
    %25 = arith.mulf %4, %24 : vector<2x16x18xf32>
    %26 = arith.addf %22, %25 : vector<2x16x18xf32>
    %27 = vector.extract_strided_slice %2 {offsets = [0, 2, 1], sizes = [2, 1, 1], strides = [1, 1, 1]} : vector<2x3x3xf32> to vector<2x1x1xf32>
    %28 = vector.broadcast %27 : vector<2x1x1xf32> to vector<2x16x18xf32>
    %29 = arith.mulf %5, %28 : vector<2x16x18xf32>
    %30 = arith.addf %26, %29 : vector<2x16x18xf32>
    %31 = vector.extract_strided_slice %30 {offsets = [0, 0, 1], sizes = [2, 16, 16], strides = [1, 1, 1]} : vector<2x16x18xf32> to vector<2x16x16xf32>
    %32 = arith.addf %19, %31 : vector<2x16x16xf32>
    %33 = vector.extract_strided_slice %2 {offsets = [0, 0, 2], sizes = [2, 1, 1], strides = [1, 1, 1]} : vector<2x3x3xf32> to vector<2x1x1xf32>
    %34 = vector.broadcast %33 : vector<2x1x1xf32> to vector<2x16x18xf32>
    %35 = arith.mulf %3, %34 : vector<2x16x18xf32>
    %36 = vector.extract_strided_slice %2 {offsets = [0, 1, 2], sizes = [2, 1, 1], strides = [1, 1, 1]} : vector<2x3x3xf32> to vector<2x1x1xf32>
    %37 = vector.broadcast %36 : vector<2x1x1xf32> to vector<2x16x18xf32>
    %38 = arith.mulf %4, %37 : vector<2x16x18xf32>
    %39 = arith.addf %35, %38 : vector<2x16x18xf32>
    %40 = vector.extract_strided_slice %2 {offsets = [0, 2, 2], sizes = [2, 1, 1], strides = [1, 1, 1]} : vector<2x3x3xf32> to vector<2x1x1xf32>
    %41 = vector.broadcast %40 : vector<2x1x1xf32> to vector<2x16x18xf32>
    %42 = arith.mulf %5, %41 : vector<2x16x18xf32>
    %43 = arith.addf %39, %42 : vector<2x16x18xf32>
    %44 = vector.extract_strided_slice %43 {offsets = [0, 0, 2], sizes = [2, 16, 16], strides = [1, 1, 1]} : vector<2x16x18xf32> to vector<2x16x16xf32>
    %45 = arith.addf %32, %44 : vector<2x16x16xf32>
    %c0_6 = arith.constant 0 : index
    %c0_7 = arith.constant 0 : index
    %c0_8 = arith.constant 0 : index
    %c0_9 = arith.constant 0 : index
    %46 = vector.load %arg4[%c0_6, %c0_7, %c0_8, %c0_9] : memref<1x2x16x16xf32, #tpu.memory_space<vmem>>, vector<1x2x16x16xf32>
    %47 = vector.shape_cast %46 : vector<1x2x16x16xf32> to vector<2x16x16xf32>
    %48 = vector.shape_cast %45 : vector<2x16x16xf32> to vector<1x2x16x16xf32>
    tpu.vector_store %arg4[%c0_6, %c0_7, %c0_8, %c0_9], %48 {strides = array<i32>} : memref<1x2x16x16xf32, #tpu.memory_space<vmem>>, vector<1x2x16x16xf32>,
    return
  }
  func.func @transform_0(%arg0: i32, %arg1: i32) -> (i32, i32, i32, i32) {
    %c0_i32 = arith.constant 0 : i32
    %c0_i32_0 = arith.constant 0 : i32
    %c0_i32_1 = arith.constant 0 : i32
    return %arg1, %arg0, %c0_i32, %c0_i32_0 : i32, i32, i32, i32
  }
  func.func @transform_1(%arg0: i32, %arg1: i32) -> (i32, i32, i32) {
    %c0_i32 = arith.constant 0 : i32
    %c0_i32_0 = arith.constant 0 : i32
    %c0_i32_1 = arith.constant 0 : i32
    return %arg0, %c0_i32, %c0_i32_0 : i32, i32, i32
  }
  func.func @transform_2(%arg0: i32, %arg1: i32) -> (i32, i32, i32, i32) {
    %c0_i32 = arith.constant 0 : i32
    %c0_i32_0 = arith.constant 0 : i32
    %c0_i32_1 = arith.constant 0 : i32
    return %arg1, %arg0, %c0_i32, %c0_i32_0 : i32, i32, i32, i32
  }
}

</mosaic_0001>

<llo_original>
// kernel: tpu_custom_call.1
$region0: #{tpu_custom_call.1}
  #allocation0 [shape = 'u32[]', space=smem, size = 0x4, offset = 0x4, fixed_abs, tag = 'smem constant byte address 0x4 - core index']
  #allocation1 [shape = 'u32[144,128]{1,0:T(1,128)}', space=vmem, size = 0x12000, scoped, tag = 'internal scratch']
  %s0 = inlined_call_operand.vmem [shape: f32[2,2,18,18], index: 0, kind: input, shape index: {}]
  %s1 = inlined_call_operand.vmem [shape: f32[2,3,3], index: 1, kind: input, shape index: {}]
  %s2 = inlined_call_operand.hbm [shape: f32[2,2,16,16], index: 2, kind: output, shape index: {}]
  %s3 = sld [smem:[#allocation0]]
  $region41: #{tpu_custom_call.1} parent=0
    _
  %s5 = ssub.s32 1, %s3
  %s6 = scalar_select 0, %s5, %s3
  $region1: #{tpu_custom_call.1} parent=0
    #allocation2 [shape = 'u8[32768]{0}', space=vmem, size = 0x8000, scoped, tag = 'output window, operand 0']
    #allocation3 [shape = 's32[2]{0}', space=sflag, size = 0x8, scoped, tag = 'scoped memory for tpu_custom_call.1']
    %7 = vsyncpa [#allocation3], 0
    %s8 = scalar_lea.sflag [#allocation3], 1
    %9 = vsyncpa %s8, 0
    loop: start=0, step=1, limit=4
    $region2: #{tpu_custom_call.1} parent=1 // loop_pre_header
      _
    $region3: #{tpu_custom_call.1} parent=1 // loop_header
      %s11 = sphi 0, %s15
      %p12 = scmp.ge.s32.totalorder %s11, 4
      %s18 = sphi 0, %s30
      %s19 = sphi 0, %s26
      %s20 = sphi 0, %s18
      %s21 = sphi 0, %s19
      %s22 = sphi 0, %s20
      %s23 = sphi 0, %s21
      %s35 = sphi 0, %s37
      %s38 = sphi 0, %s35
      %s39 = sphi 0, %s38
      %s55 = sphi 0, %s39
      %s61 = sphi 0, %s63
      %s64 = sphi 0, %s61
      %s65 = sphi 0, %s64
      %s81 = sphi 0, %s65
      %s89 = sphi 0, %s91
      %s92 = sphi 0, %s89
      %s93 = sphi 0, %s92
      %s109 = sphi 0, %s93
    $region4: #{tpu_custom_call.1} parent=1 // loop_header_branch
      %14 = sbr.rel (%p12) target = $region8
    $region5: #{tpu_custom_call.1} parent=1 // loop_body
      %s16 = ssub.s32 %s11, 1
      %s17 = ssub.s32 %s11, 2
      %s24 = sadd.s32 1, %s19
      %p25 = scmp.ge.s32.totalorder %s24, 2
      %s26 = scalar_select %p25, 0, %s24
      %s27 = sadd.s32 1, %s18
      %s28 = scalar_select %p25, %s27, %s18
      %p29 = scmp.ge.s32.totalorder %s28, 1
      %s30 = scalar_select %p29, 0, %s28
      %s31 = ssub.s32 %s19, %s26
      %s32 = ssub.s32 %s18, %s30
      %s33 = sor.u32 %s31, %s32
      %p34 = scmp.eq.s32.totalorder %s33, 0
      %s36 = sadd.s32 %s35, 1
      %s37 = scalar_select %p34, %s35, %s36
      %p40 = pneg %p34
      %p41 = scmp.eq.s32.totalorder %s11, 1
      %p42 = por %p40, %p41
      %p43 = scmp.ne.s32.totalorder %s35, %s38
      %p44 = scmp.eq.s32.totalorder %s11, 0
      %p45 = por %p43, %p44
      %p46 = scmp.ne.s32.totalorder %s35, %s38
      %p47 = scmp.eq.s32.totalorder %s16, 1
      %p48 = por %p46, %p47
      %p49 = scmp.ne.s32.totalorder %s38, %s39
      %p50 = scmp.eq.s32.totalorder %s16, 0
      %p51 = por %p49, %p50
      %p52 = scmp.ne.s32.totalorder %s38, %s39
      %p53 = scmp.eq.s32.totalorder %s17, 1
      %p54 = por %p52, %p53
      %p56 = scmp.ne.s32.totalorder %s39, %s55
      %p57 = scmp.eq.s32.totalorder %s17, 0
      %p58 = por %p56, %p57
      %s59 = ssub.s32 %s18, %s30
      %p60 = scmp.eq.s32.totalorder %s59, 0
      %s62 = sadd.s32 %s61, 1
      %s63 = scalar_select %p60, %s61, %s62
      %p66 = pneg %p60
      %p67 = scmp.eq.s32.totalorder %s11, 1
      %p68 = por %p66, %p67
      %p69 = scmp.ne.s32.totalorder %s61, %s64
      %p70 = scmp.eq.s32.totalorder %s11, 0
      %p71 = por %p69, %p70
      %p72 = scmp.ne.s32.totalorder %s61, %s64
      %p73 = scmp.eq.s32.totalorder %s16, 1
      %p74 = por %p72, %p73
      %p75 = scmp.ne.s32.totalorder %s64, %s65
      %p76 = scmp.eq.s32.totalorder %s16, 0
      %p77 = por %p75, %p76
      %p78 = scmp.ne.s32.totalorder %s64, %s65
      %p79 = scmp.eq.s32.totalorder %s17, 1
      %p80 = por %p78, %p79
      %p82 = scmp.ne.s32.totalorder %s65, %s81
      %p83 = scmp.eq.s32.totalorder %s17, 0
      %p84 = por %p82, %p83
      %s85 = ssub.s32 %s19, %s26
      %s86 = ssub.s32 %s18, %s30
      %s87 = sor.u32 %s85, %s86
      %p88 = scmp.eq.s32.totalorder %s87, 0
      %s90 = sadd.s32 %s89, 1
      %s91 = scalar_select %p88, %s89, %s90
      %p94 = pneg %p88
      %p95 = scmp.eq.s32.totalorder %s11, 1
      %p96 = por %p94, %p95
      %p97 = scmp.ne.s32.totalorder %s89, %s92
      %p98 = scmp.eq.s32.totalorder %s11, 0
      %p99 = por %p97, %p98
      %p100 = scmp.ne.s32.totalorder %s89, %s92
      %p101 = scmp.eq.s32.totalorder %s16, 1
      %p102 = por %p100, %p101
      %p103 = scmp.ne.s32.totalorder %s92, %s93
      %p104 = scmp.eq.s32.totalorder %s16, 0
      %p105 = por %p103, %p104
      %p106 = scmp.ne.s32.totalorder %s92, %s93
      %p107 = scmp.eq.s32.totalorder %s17, 1
      %p108 = por %p106, %p107
      %p110 = scmp.ne.s32.totalorder %s93, %s109
      %p111 = scmp.eq.s32.totalorder %s17, 0
      %p112 = por %p110, %p111
      %p113 = scmp.le.s32.totalorder 1, %s11
      %p114 = scmp.lt.s32.totalorder %s11, 3
      %p115 = pnand %p113, %p114
      %p116 = pneg %p115
      // Predicated region
      $region9: #{tpu_custom_call.1} parent=5 // pred_check
        _
      $region10: #{tpu_custom_call.1} parent=5 // pred_check_branch
        %118 = sbr.rel (%p115) target = $region12
      $region11: #{tpu_custom_call.1} parent=5 // pred_region
        %s119 = ssub.s32 %s11, 1
        // Predicated region
        $region13: #{tpu_custom_call.1} parent=11 // pred_check
          %p120 = pneg %p77
        $region14: #{tpu_custom_call.1} parent=11 // pred_check_branch
          %122 = sbr.rel (%p120) target = $region16
        $region15: #{tpu_custom_call.1} parent=11 // pred_region
          %s123 = smul.u32 2, %s20
          %p124 = scmp.lt.s32.totalorder %s123, 1
          %s125 = scalar_select %p124, %s123, 1
          %s126 = smul.addr %s125, 4
          %s127 = scalar_lea.vmem %s1, %s126
          %s128 = smul.u32 2, %s20
        $region16: #{tpu_custom_call.1} parent=11 // pred_fallthru
          _
      $region12: #{tpu_custom_call.1} parent=5 // pred_fallthru
        _
      %p129 = scmp.lt.s32.totalorder %s11, 2
      // Predicated region
      $region17: #{tpu_custom_call.1} parent=5 // pred_check
        %p130 = pneg %p129
      $region18: #{tpu_custom_call.1} parent=5 // pred_check_branch
        %132 = sbr.rel (%p130) target = $region20
      $region19: #{tpu_custom_call.1} parent=5 // pred_region
        // Predicated region
        $region21: #{tpu_custom_call.1} parent=19 // pred_check
          %p133 = pneg %p45
        $region22: #{tpu_custom_call.1} parent=19 // pred_check_branch
          %135 = sbr.rel (%p133) target = $region24
        $region23: #{tpu_custom_call.1} parent=19 // pred_region
          %s136 = smul.u32 2, %s18
          %p137 = scmp.lt.s32.totalorder %s19, 1
          %s138 = scalar_select %p137, %s19, 1
          %p139 = scmp.lt.s32.totalorder %s136, 1
          %s140 = scalar_select %p139, %s136, 1
          %s141 = smul.addr %s140, 3
          %s142 = smul.addr %s138, 6
          %s143 = sadd.s32 %s141, %s142
          %s144 = smul.addr %s143, 8
          %s145 = scalar_lea.vmem %s0, %s144
          %s146 = smul.u32 2, %s18
        $region24: #{tpu_custom_call.1} parent=19 // pred_fallthru
          _
      $region20: #{tpu_custom_call.1} parent=5 // pred_fallthru
        _
      %p147 = scmp.le.s32.totalorder 1, %s11
      %p148 = scmp.lt.s32.totalorder %s11, 3
      %p149 = pnand %p147, %p148
      %p150 = pneg %p149
      // Predicated region
      $region25: #{tpu_custom_call.1} parent=5 // pred_check
        _
      $region26: #{tpu_custom_call.1} parent=5 // pred_check_branch
        %152 = sbr.rel (%p149) target = $region28
      $region27: #{tpu_custom_call.1} parent=5 // pred_region
        %s153 = ssub.s32 %s11, 1
        %s154 = smul.u32 2, %s20
        %p155 = scmp.lt.s32.totalorder %s21, 1
        %s156 = scalar_select %p155, %s21, 1
        %p157 = scmp.lt.s32.totalorder %s154, 1
        %s158 = scalar_select %p157, %s154, 1
        %s159 = smul.addr %s158, 3
        %s160 = smul.addr %s156, 6
        %s161 = sadd.s32 %s159, %s160
        %s162 = smul.addr %s161, 8
        %s163 = scalar_lea.vmem %s0, %s162
        %p164 = pneg %p51
        %p165 = pneg %p48
        %s166 = smul.u32 2, %s20
        %p167 = scmp.lt.s32.totalorder %s166, 1
        %s168 = scalar_select %p167, %s166, 1
        %s169 = smul.addr %s168, 4
        %s170 = scalar_lea.vmem %s1, %s169
        %p171 = pneg %p77
        %p172 = pneg %p74
        %p173 = pneg %p105
        %p174 = pneg %p102
        %s175 = sand.u32 %s92, 1
        %s176 = scalar_lea.sflag [#allocation3], %s175
        %s177 = sand.u32 %s92, 1
        %s178 = smul.addr %s177, 32
        %s179 = scalar_lea.vmem [#allocation2], %s178
        %s180 = smul.u32 2, %s20
        %p181 = scmp.lt.s32.totalorder %s21, 1
        %s182 = scalar_select %p181, %s21, 1
        %p183 = scmp.lt.s32.totalorder %s180, 1
        %s184 = scalar_select %p183, %s180, 1
        %s185 = smul.addr %s184, 3
        %s186 = smul.addr %s182, 6
        %s187 = sadd.s32 %s185, %s186
        %s188 = smul.addr %s187, 8
        %s189 = scalar_lea.vmem %s0, %s188
        %s190 = smul.u32 2, %s20
        %s191 = smul.u32 2, %s20
        %p192 = scmp.lt.s32.totalorder %s191, 1
        %s193 = scalar_select %p192, %s191, 1
        %s194 = smul.addr %s193, 4
        %s195 = scalar_lea.vmem %s1, %s194
        %s196 = smul.u32 2, %s20
        %s197 = smul.u32 2, %s20
        %v198 = vld [vmem:[%s189] sm:$0xff]
        %v199 = vld [vmem:[%s189 + $0x8] sm:$0xff]
        %v200 = vld [vmem:[%s189 + $0x10] sm:$0x3]
        %v201 = vld [vmem:[%s189 + $0x18] sm:$0xff]
        %v202 = vld [vmem:[%s189 + $0x20] sm:$0xff]
        %v203 = vld [vmem:[%s189 + $0x28] sm:$0x3]
        %v204 = vld [vmem:[%s195] sm:$0x7]
        %v205 = vld [vmem:[%s195 + $0x4] sm:$0x7]
        %s207 = vtos %v204
        %v208 = vstv %s207
        %s211 = vtos %v205
        %v212 = vstv %s211
        %v214 = vmul.f32 %v198, %v208
        %v215 = vmul.f32 %v199, %v208
        %v216 = vmul.f32 %v201, %v212
        %v217 = vmul.f32 %v202, %v212
        %v218 = vrot.slane %v204, 1
        %v219 = vrot.slane %v205, 1
        %s220 = vtos %v218
        %v221 = vstv %s220
        %s223 = vtos %v219
        %v224 = vstv %s223
        %v226 = vmul.f32 %v198, %v221
        %v227 = vmul.f32 %v199, %v221
        %v228 = vmul.f32 %v200, %v221
        %v229 = vmul.f32 %v201, %v224
        %v230 = vmul.f32 %v202, %v224
        %v231 = vmul.f32 %v203, %v224
        %vm238 = vcmask 1046528
        %v239 = vrot.slane %v226, 1
        %v240 = vrot.slane %v227, 1
        %v241 = vsel %vm238, %v239, %v240
        %v242 = vrot.slane %v228, 1
        %v243 = vsel %vm238, %v240, %v242
        %v244 = vrot.slane %v229, 1
        %v245 = vrot.slane %v230, 1
        %v246 = vsel %vm238, %v244, %v245
        %v247 = vrot.slane %v231, 1
        %v248 = vsel %vm238, %v245, %v247
        %v253 = vadd.f32 %v214, %v241
        %v254 = vadd.f32 %v215, %v243
        %v255 = vadd.f32 %v216, %v246
        %v256 = vadd.f32 %v217, %v248
        %v257 = vrot.slane %v204, 2
        %v258 = vrot.slane %v205, 2
        %s259 = vtos %v257
        %v260 = vstv %s259
        %s262 = vtos %v258
        %v263 = vstv %s262
        %v265 = vmul.f32 %v198, %v260
        %v266 = vmul.f32 %v199, %v260
        %v267 = vmul.f32 %v200, %v260
        %v268 = vmul.f32 %v201, %v263
        %v269 = vmul.f32 %v202, %v263
        %v270 = vmul.f32 %v203, %v263
        %vm277 = vcmask 1045504
        %v278 = vrot.slane %v265, 2
        %v279 = vrot.slane %v266, 2
        %v280 = vsel %vm277, %v278, %v279
        %v281 = vrot.slane %v267, 2
        %v282 = vsel %vm277, %v279, %v281
        %v283 = vrot.slane %v268, 2
        %v284 = vrot.slane %v269, 2
        %v285 = vsel %vm277, %v283, %v284
        %v286 = vrot.slane %v270, 2
        %v287 = vsel %vm277, %v284, %v286
        %v292 = vadd.f32 %v253, %v280
        %v293 = vadd.f32 %v254, %v282
        %v294 = vadd.f32 %v255, %v285
        %v295 = vadd.f32 %v256, %v287
        %v296 = vadd.f32 %v292, 0.0
        %v297 = vadd.f32 %v293, 0.0
        %v298 = vadd.f32 %v294, 0.0
        %v299 = vadd.f32 %v295, 0.0
        %300 = vrot.lane.b32.xlu0 %v204, 127
        %v301 = vpop.permute.xlu0 %300
        %302 = vrot.lane.b32.xlu0 %v205, 127
        %v303 = vpop.permute.xlu0 %302
        %s304 = vtos %v301
        %v305 = vstv %s304
        %s307 = vtos %v303
        %v308 = vstv %s307
        %v310 = vmul.f32 %v198, %v305
        %v311 = vmul.f32 %v199, %v305
        %v312 = vmul.f32 %v201, %v308
        %v313 = vmul.f32 %v202, %v308
        %314 = vrot.lane.b32.xlu0 %v218, 127
        %v315 = vpop.permute.xlu0 %314
        %316 = vrot.lane.b32.xlu0 %v219, 127
        %v317 = vpop.permute.xlu0 %316
        %s318 = vtos %v315
        %v319 = vstv %s318
        %s321 = vtos %v317
        %v322 = vstv %s321
        %v324 = vmul.f32 %v198, %v319
        %v325 = vmul.f32 %v199, %v319
        %v326 = vmul.f32 %v200, %v319
        %v327 = vmul.f32 %v201, %v322
        %v328 = vmul.f32 %v202, %v322
        %v329 = vmul.f32 %v203, %v322
        %v336 = vrot.slane %v324, 1
        %v337 = vrot.slane %v325, 1
        %v338 = vsel %vm238, %v336, %v337
        %v339 = vrot.slane %v326, 1
        %v340 = vsel %vm238, %v337, %v339
        %v341 = vrot.slane %v327, 1
        %v342 = vrot.slane %v328, 1
        %v343 = vsel %vm238, %v341, %v342
        %v344 = vrot.slane %v329, 1
        %v345 = vsel %vm238, %v342, %v344
        %v350 = vadd.f32 %v310, %v338
        %v351 = vadd.f32 %v311, %v340
        %v352 = vadd.f32 %v312, %v343
        %v353 = vadd.f32 %v313, %v345
        %354 = vrot.lane.b32.xlu0 %v257, 127
        %v355 = vpop.permute.xlu0 %354
        %356 = vrot.lane.b32.xlu0 %v258, 127
        %v357 = vpop.permute.xlu0 %356
        %s358 = vtos %v355
        %v359 = vstv %s358
        %s361 = vtos %v357
        %v362 = vstv %s361
        %v364 = vmul.f32 %v198, %v359
        %v365 = vmul.f32 %v199, %v359
        %v366 = vmul.f32 %v200, %v359
        %v367 = vmul.f32 %v201, %v362
        %v368 = vmul.f32 %v202, %v362
        %v369 = vmul.f32 %v203, %v362
        %v376 = vrot.slane %v364, 2
        %v377 = vrot.slane %v365, 2
        %v378 = vsel %vm277, %v376, %v377
        %v379 = vrot.slane %v366, 2
        %v380 = vsel %vm277, %v377, %v379
        %v381 = vrot.slane %v367, 2
        %v382 = vrot.slane %v368, 2
        %v383 = vsel %vm277, %v381, %v382
        %v384 = vrot.slane %v369, 2
        %v385 = vsel %vm277, %v382, %v384
        %v390 = vadd.f32 %v350, %v378
        %v391 = vadd.f32 %v351, %v380
        %v392 = vadd.f32 %v352, %v383
        %v393 = vadd.f32 %v353, %v385
        %398 = vrot.lane.b32.xlu0 %v390, 127
        %v399 = vpop.permute.xlu0 %398
        %400 = vrot.lane.b32.xlu0 %v391, 127
        %v401 = vpop.permute.xlu0 %400
        %402 = vrot.lane.b32.xlu0 %v392, 127
        %v403 = vpop.permute.xlu0 %402
        %404 = vrot.lane.b32.xlu0 %v393, 127
        %v405 = vpop.permute.xlu0 %404
        %v410 = vadd.f32 %v296, %v399
        %v411 = vadd.f32 %v297, %v401
        %v412 = vadd.f32 %v298, %v403
        %v413 = vadd.f32 %v299, %v405
        %414 = vrot.lane.b32.xlu0 %v204, 126
        %v415 = vpop.permute.xlu0 %414
        %416 = vrot.lane.b32.xlu0 %v205, 126
        %v417 = vpop.permute.xlu0 %416
        %s418 = vtos %v415
        %v419 = vstv %s418
        %s421 = vtos %v417
        %v422 = vstv %s421
        %v424 = vmul.f32 %v198, %v419
        %v425 = vmul.f32 %v199, %v419
        %v426 = vmul.f32 %v201, %v422
        %v427 = vmul.f32 %v202, %v422
        %428 = vrot.lane.b32.xlu0 %v218, 126
        %v429 = vpop.permute.xlu0 %428
        %430 = vrot.lane.b32.xlu0 %v219, 126
        %v431 = vpop.permute.xlu0 %430
        %s432 = vtos %v429
        %v433 = vstv %s432
        %s435 = vtos %v431
        %v436 = vstv %s435
        %v438 = vmul.f32 %v198, %v433
        %v439 = vmul.f32 %v199, %v433
        %v440 = vmul.f32 %v200, %v433
        %v441 = vmul.f32 %v201, %v436
        %v442 = vmul.f32 %v202, %v436
        %v443 = vmul.f32 %v203, %v436
        %v450 = vrot.slane %v438, 1
        %v451 = vrot.slane %v439, 1
        %v452 = vsel %vm238, %v450, %v451
        %v453 = vrot.slane %v440, 1
        %v454 = vsel %vm238, %v451, %v453
        %v455 = vrot.slane %v441, 1
        %v456 = vrot.slane %v442, 1
        %v457 = vsel %vm238, %v455, %v456
        %v458 = vrot.slane %v443, 1
        %v459 = vsel %vm238, %v456, %v458
        %v464 = vadd.f32 %v424, %v452
        %v465 = vadd.f32 %v425, %v454
        %v466 = vadd.f32 %v426, %v457
        %v467 = vadd.f32 %v427, %v459
        %468 = vrot.lane.b32.xlu0 %v257, 126
        %v469 = vpop.permute.xlu0 %468
        %470 = vrot.lane.b32.xlu0 %v258, 126
        %v471 = vpop.permute.xlu0 %470
        %s472 = vtos %v469
        %v473 = vstv %s472
        %s475 = vtos %v471
        %v476 = vstv %s475
        %v478 = vmul.f32 %v198, %v473
        %v479 = vmul.f32 %v199, %v473
        %v480 = vmul.f32 %v200, %v473
        %v481 = vmul.f32 %v201, %v476
        %v482 = vmul.f32 %v202, %v476
        %v483 = vmul.f32 %v203, %v476
        %v490 = vrot.slane %v478, 2
        %v491 = vrot.slane %v479, 2
        %v492 = vsel %vm277, %v490, %v491
        %v493 = vrot.slane %v480, 2
        %v494 = vsel %vm277, %v491, %v493
        %v495 = vrot.slane %v481, 2
        %v496 = vrot.slane %v482, 2
        %v497 = vsel %vm277, %v495, %v496
        %v498 = vrot.slane %v483, 2
        %v499 = vsel %vm277, %v496, %v498
        %v504 = vadd.f32 %v464, %v492
        %v505 = vadd.f32 %v465, %v494
        %v506 = vadd.f32 %v466, %v497
        %v507 = vadd.f32 %v467, %v499
        %512 = vrot.lane.b32.xlu0 %v504, 126
        %v513 = vpop.permute.xlu0 %512
        %514 = vrot.lane.b32.xlu0 %v505, 126
        %v515 = vpop.permute.xlu0 %514
        %516 = vrot.lane.b32.xlu0 %v506, 126
        %v517 = vpop.permute.xlu0 %516
        %518 = vrot.lane.b32.xlu0 %v507, 126
        %v519 = vpop.permute.xlu0 %518
        %v524 = vadd.f32 %v410, %v513
        %v525 = vadd.f32 %v411, %v515
        %v526 = vadd.f32 %v412, %v517
        %v527 = vadd.f32 %v413, %v519
        %vm528 = vcmask 130048
        %529 = vst.msk [vmem:[%s179] sm:$0xff] %vm528, %v524
        %530 = vst.msk [vmem:[%s179 + $0x8] sm:$0xff] %vm528, %v525
        %531 = vst.msk [vmem:[%s179 + $0x10] sm:$0xff] %vm528, %v526
        %532 = vst.msk [vmem:[%s179 + $0x18] sm:$0xff] %vm528, %v527
        %s533 = sand.u32 %s92, 1
        %s534 = scalar_lea.sflag [#allocation3], %s533
        %s535 = sand.u32 %s92, 1
        %s536 = smul.addr %s535, 32
        %s537 = scalar_lea.vmem [#allocation2], %s536
        // Predicated region
        $region29: #{tpu_custom_call.1} parent=27 // pred_check
          %p538 = pneg %p102
        $region30: #{tpu_custom_call.1} parent=27 // pred_check_branch
          %540 = sbr.rel (%p538) target = $region32
        $region31: #{tpu_custom_call.1} parent=27 // pred_region
          %s541 = smul.u32 2, %s20
          %s543 = ssub.s32 512, 512
          %544 = vsyncadd %s534, %s543
          %s545 = smul.addr %s541, 2
          %s546 = smul.addr %s21, 4
          %s547 = sadd.s32 %s545, %s546
          %s548 = smul.addr %s547, 128
          %s549 = scalar_lea.hbm %s2, %s548
          %s550 = sshll.u32 %s537, 4
          %s551 = int_to_ptr.vmem [resolvable:$true] %s550
          %556 = dma.vmem_to_hbm [thread:$0]  %s551, 512, %s549, %s534, 128, 128, 8
        $region32: #{tpu_custom_call.1} parent=27 // pred_fallthru
          _
      $region28: #{tpu_custom_call.1} parent=5 // pred_fallthru
        _
      %p557 = scmp.le.s32.totalorder 2, %s11
      // Predicated region
      $region33: #{tpu_custom_call.1} parent=5 // pred_check
        %p558 = pneg %p557
      $region34: #{tpu_custom_call.1} parent=5 // pred_check_branch
        %560 = sbr.rel (%p558) target = $region36
      $region35: #{tpu_custom_call.1} parent=5 // pred_region
        %s561 = ssub.s32 %s11, 2
        // Predicated region
        $region37: #{tpu_custom_call.1} parent=35 // pred_check
          %p562 = pneg %p108
        $region38: #{tpu_custom_call.1} parent=35 // pred_check_branch
          %564 = sbr.rel (%p562) target = $region40
        $region39: #{tpu_custom_call.1} parent=35 // pred_region
          %s565 = sand.u32 %s93, 1
          %s566 = scalar_lea.sflag [#allocation3], %s565
          %s567 = sand.u32 %s93, 1
          %s568 = smul.addr %s567, 32
          %s569 = scalar_lea.vmem [#allocation2], %s568
          %570 = dma.done %s566, 512
        $region40: #{tpu_custom_call.1} parent=35 // pred_fallthru
          _
      $region36: #{tpu_custom_call.1} parent=5 // pred_fallthru
        _
    $region6: #{tpu_custom_call.1} parent=1 // loop_footer
      %s15 = sadd.s32 1, %s11
    $region7: #{tpu_custom_call.1} parent=1 // loop_footer_branch
      %10 = sbr.rel target = $region3
    $region8: #{tpu_custom_call.1} parent=1 // loop_exit
      _
    %571 = vsyncpa [#allocation3], 1
    %s572 = scalar_lea.sflag [#allocation3], 1
    %573 = vsyncpa %s572, 1

</llo_original>
